<compile_context>
chip_gen: v7x
topology: tpu7x:2x2x1
jax: 0.10.0
libtpu: 0.0.40
codegen_flags: <defaults>
</compile_context>

<pallas_src>
import math

import jax
import jax.numpy as jnp
from jax import lax
from jax.experimental import pallas as pl
from jax.experimental.pallas import tpu as pltpu


def _round_up(x, m):
    return ((x + m - 1) // m) * m


# ---------------- Pallas kernel 1: TopK attention score ---------------------
def _score_kernel(x_ref, w_ref, out_ref):
    # x_ref: (tile_n, C), w_ref: (1, C) pre-normalized, out_ref: (1, tile_n).
    # VPU multiply + cross-lane reduce (memory-bound kernel; MXU not needed).
    # Result is stored lane-dense so the write path is full vst, not masked vst.msk.
    s = jnp.sum(x_ref[...] * w_ref[...], axis=-1)        # (tile_n,)
    out_ref[...] = jnp.tanh(s)[None, :]                  # (1, tile_n)


def topk_scores(x, w_normalized, *, tile_n=1024):
    """tanh(x @ w_n.T) for a pre-normalized weight row w_n. Returns (N,) float32."""
    N, C = x.shape
    # Keep the double-buffered input tile comfortably inside scoped VMEM for wide C.
    vmem_cap_rows = max(128, (8 * 1024 * 1024) // max(1, C * 4))
    tile_n = max(128, (min(tile_n, vmem_cap_rows) // 128) * 128)
    if N <= tile_n:
        tile_n = max(8, _round_up(N, 8))                 # single tile covers all rows
    N_pad = _round_up(N, tile_n)
    if N_pad != N:
        x = jnp.pad(x, ((0, N_pad - N), (0, 0)))         # padded rows score tanh(0)=0, sliced off
    out = pl.pallas_call(
        _score_kernel,
        out_shape=jax.ShapeDtypeStruct((1, N_pad), jnp.float32),
        grid=(N_pad // tile_n,),
        in_specs=[
            pl.BlockSpec((tile_n, C), lambda i: (i, 0)),
            pl.BlockSpec((1, C), lambda i: (0, 0)),
        ],
        out_specs=pl.BlockSpec((1, tile_n), lambda i: (0, i)),   # lane-dense output
        compiler_params=pltpu.CompilerParams(dimension_semantics=("parallel",)),
    )(x, w_normalized)
    return out[0, :N]


# ------- Pallas kernel 2: DMA row-gather of selected nodes, scaled by score ----
def _gather_scale_kernel(perm_ref, x_hbm_ref, s_ref, out_ref, buf_ref, sem_ref):
    # perm_ref: (K_pad,) int32 in SMEM (scalar prefetch)
    # x_hbm_ref: (N, C) left in HBM (memory_space=pl.ANY); rows gathered by manual DMA
    # s_ref: (tile_k, 1) score[perm] tile; out_ref: (tile_k, C)
    tile_k = out_ref.shape[0]
    base = pl.program_id(0) * tile_k

    def issue(j, carry):
        row = perm_ref[base + j]
        pltpu.make_async_copy(
            x_hbm_ref.at[pl.ds(row, 1)],
            buf_ref.at[pl.ds(j, 1)],
            sem_ref.at[j],
        ).start()
        return carry

    lax.fori_loop(0, tile_k, issue, 0)

    def wait(j, carry):
        pltpu.make_async_copy(
            x_hbm_ref.at[pl.ds(0, 1)],        # shape-only src; wait keys on sem_ref[j]
            buf_ref.at[pl.ds(j, 1)],
            sem_ref.at[j],
        ).wait()
        return carry

    lax.fori_loop(0, tile_k, wait, 0)

    # Scale AFTER the gather: K*C multiplies instead of N*C, no (N,C) temporary.
    out_ref[...] = (buf_ref[...] * s_ref[...]).astype(out_ref.dtype)


def gather_scale(x, score_sel, perm, *, tile_k=128):
    """out[i] = x[perm[i]] * score_sel[i]; DMA row gather with perm scalar-prefetched to SMEM."""
    N, C = x.shape
    K = perm.shape[0]
    perm = perm.astype(jnp.int32)
    if K <= tile_k:
        tile_k = K                                        # single tile (block == full dims)
    K_pad = _round_up(K, tile_k)
    if K_pad != K:
        perm = jnp.pad(perm, (0, K_pad - K))              # padded slots fetch row 0; sliced off
        score_sel = jnp.pad(score_sel, ((0, K_pad - K), (0, 0)))
    # TODO(synk): double-buffer the per-tile row DMAs across grid steps to hide gather latency.
    out = pl.pallas_call(
        _gather_scale_kernel,
        out_shape=jax.ShapeDtypeStruct((K_pad, C), x.dtype),
        grid_spec=pltpu.PrefetchScalarGridSpec(
            num_scalar_prefetch=1,
            grid=(K_pad // tile_k,),
            in_specs=[
                pl.BlockSpec(memory_space=pl.ANY),                       # x stays in HBM
                pl.BlockSpec((tile_k, 1), lambda i, perm_ref: (i, 0)),   # score[perm] tile
            ],
            out_specs=pl.BlockSpec((tile_k, C), lambda i, perm_ref: (i, 0)),
            scratch_shapes=[
                pltpu.VMEM((tile_k, C), x.dtype),
                pltpu.SemaphoreType.DMA((tile_k,)),
            ],
        ),
        compiler_params=pltpu.CompilerParams(dimension_semantics=("parallel",)),
    )(perm, x, score_sel)
    return out[:K]


# -------------------------------- Pool module --------------------------------
class Pool:
    """JAX/Pallas port of `Pool` (a thin wrapper around TopKPooling(channels, ratio))."""

    def __init__(self, channels, ratio, key):
        self.channels = channels
        self.ratio = ratio
        # TopKPooling's `uniform(in_channels, weight)` init: U(-1/sqrt(C), 1/sqrt(C)).
        bound = 1.0 / math.sqrt(channels)
        self.weight = jax.random.uniform(
            key, (1, channels), jnp.float32, minval=-bound, maxval=bound
        )

    def __call__(self, x, edge_index, batch, *, num_graphs, nodes_per_graph):
        N, C = x.shape

        # Hoisted weight normalization: one tiny op per call, constant across the score grid.
        w = self.weight
        w_n = w * lax.rsqrt(jnp.sum(w * w))

        # 1) attention scores (Pallas kernel, lane-dense output)
        score = topk_scores(x, w_n)                                  # (N,) f32

        # 2) per-graph top-k selection (static shapes: equal-sized graphs)
        # TODO(synk): ragged graphs / data-dependent per-graph k have no static-shape equivalent.
        k = int(math.ceil(self.ratio * nodes_per_graph))
        score_g = score.reshape(num_graphs, nodes_per_graph)
        order = jnp.argsort(-score_g, axis=1)[:, :k]                 # (G, k), descending
        perm = (
            order + jnp.arange(num_graphs, dtype=order.dtype)[:, None] * nodes_per_graph
        ).reshape(-1).astype(jnp.int32)                              # (K,)

        # 3) x_out = x[perm] * score[perm]  (Pallas DMA row-gather kernel; scale after gather)
        score_sel = score[perm].reshape(-1, 1)                       # (K, 1) tiny gather
        x_out = gather_scale(x, score_sel, perm)                     # (K, C)
        batch_out = batch[perm]                                      # (K,)

        # 4) filter_adj: keep edges with both endpoints surviving, relabel to new ids.
        # TODO(synk): PyG returns a dynamically sized edge_index; here kept edges are
        # compacted to the front and dropped slots are padded with -1 (static [2, E]).
        K = perm.shape[0]
        new_id = jnp.full((N,), -1, jnp.int32).at[perm].set(jnp.arange(K, dtype=jnp.int32))
        new_src = new_id[edge_index[0]]
        new_dst = new_id[edge_index[1]]
        mask = (new_src >= 0) & (new_dst >= 0)
        relabeled = jnp.where(mask, jnp.stack([new_src, new_dst]), -1)
        order_e = jnp.argsort(jnp.where(mask, 0, 1))                 # stable: valid edges first
        edge_index_out = relabeled[:, order_e]

        return x_out, edge_index_out, batch_out


if __name__ == "__main__":
    key = jax.random.PRNGKey(0)
    k_w, k_x, k_src, k_dst = jax.random.split(key, 4)

    channels = 32
    ratio = 0.5
    num_graphs = 2
    nodes_per_graph = 8
    N = num_graphs * nodes_per_graph
    E = 24

    x = jax.random.normal(k_x, (N, channels), jnp.float32)
    batch = jnp.repeat(jnp.arange(num_graphs, dtype=jnp.int32), nodes_per_graph)

    # Deterministic within-graph random edges.
    e_per = E // num_graphs
    srcs, dsts = [], []
    for g in range(num_graphs):
        ks, kd = jax.random.fold_in(k_src, g), jax.random.fold_in(k_dst, g)
        srcs.append(jax.random.randint(ks, (e_per,), 0, nodes_per_graph) + g * nodes_per_graph)
        dsts.append(jax.random.randint(kd, (e_per,), 0, nodes_per_graph) + g * nodes_per_graph)
    edge_index = jnp.stack([jnp.concatenate(srcs), jnp.concatenate(dsts)]).astype(jnp.int32)

    pool = Pool(channels, ratio, k_w)
    x_out, edge_index_out, batch_out = pool(
        x, edge_index, batch, num_graphs=num_graphs, nodes_per_graph=nodes_per_graph
    )
    jax.block_until_ready((x_out, edge_index_out, batch_out))

    K = num_graphs * math.ceil(ratio * nodes_per_graph)
    assert x_out.shape == (K, channels) and x_out.dtype == jnp.float32
    assert batch_out.shape == (K,)
    assert edge_index_out.shape == (2, E)

    # Pure-JAX reference check of the pooled node features.
    w = pool.weight
    score_ref = jnp.tanh((x @ w.T) / jnp.linalg.norm(w)).reshape(-1)
    kk = math.ceil(ratio * nodes_per_graph)
    order_ref = jnp.argsort(-score_ref.reshape(num_graphs, nodes_per_graph), axis=1)[:, :kk]
    perm_ref = (
        order_ref + jnp.arange(num_graphs, dtype=order_ref.dtype)[:, None] * nodes_per_graph
    ).reshape(-1)
    x_ref_out = x[perm_ref] * score_ref[perm_ref][:, None]
    assert jnp.allclose(x_out, x_ref_out, atol=1e-4, rtol=1e-4)

    print("KERNEL_OK")
</pallas_src>

<mosaic_0001>
module attributes {stable_mosaic.version = 11 : i64} {
  func.func @_score_kernel(%arg0: i32, %arg1: memref<16x32xf32, #tpu.memory_space<vmem>>, %arg2: memref<1x32xf32, #tpu.memory_space<vmem>>, %arg3: memref<1x16xf32, #tpu.memory_space<vmem>>) attributes {dimension_semantics = [#tpu.dimension_semantics<parallel>], iteration_bounds = array<i64: 1>, scalar_prefetch = 0 : i64, scratch_operands = 0 : i64, tpu.core_type = #tpu.core_type<tc>, window_params = [{transform_indices = @transform_0, window_bounds = array<i64: 16, 32>}, {pipeline_mode = #tpu.pipeline_mode<synchronous>, transform_indices = @transform_1, window_bounds = array<i64: 1, 32>}, {transform_indices = @transform_2, window_bounds = array<i64: 1, 16>}]} {
    %c0 = arith.constant 0 : index
    %c0_0 = arith.constant 0 : index
    %0 = vector.load %arg1[%c0, %c0_0] : memref<16x32xf32, #tpu.memory_space<vmem>>, vector<16x32xf32>
    %c0_1 = arith.constant 0 : index
    %c0_2 = arith.constant 0 : index
    %1 = vector.load %arg2[%c0_1, %c0_2] : memref<1x32xf32, #tpu.memory_space<vmem>>, vector<1x32xf32>
    %2 = vector.broadcast %1 : vector<1x32xf32> to vector<16x32xf32>
    %3 = arith.mulf %0, %2 : vector<16x32xf32>
    %cst = arith.constant dense<0.000000e+00> : vector<16xf32>
    %4 = vector.multi_reduction <add>, %3, %cst [1] : vector<16x32xf32> to vector<16xf32>
    %5 = math.tanh %4 : vector<16xf32>
    %6 = vector.shape_cast %5 : vector<16xf32> to vector<1x16xf32>
    %c0_3 = arith.constant 0 : index
    %c0_4 = arith.constant 0 : index
    %7 = vector.load %arg3[%c0_3, %c0_4] : memref<1x16xf32, #tpu.memory_space<vmem>>, vector<1x16xf32>
    tpu.vector_store %arg3[%c0_3, %c0_4], %6 {strides = array<i32>} : memref<1x16xf32, #tpu.memory_space<vmem>>, vector<1x16xf32>,
    return
  }
  func.func @transform_0(%arg0: i32) -> (i32, i32) {
    %c0_i32 = arith.constant 0 : i32
    %c0_i32_0 = arith.constant 0 : i32
    return %arg0, %c0_i32 : i32, i32
  }
  func.func @transform_1(%arg0: i32) -> (i32, i32) {
    %c0_i32 = arith.constant 0 : i32
    %c0_i32_0 = arith.constant 0 : i32
    %c0_i32_1 = arith.constant 0 : i32
    return %c0_i32, %c0_i32_0 : i32, i32
  }
  func.func @transform_2(%arg0: i32) -> (i32, i32) {
    %c0_i32 = arith.constant 0 : i32
    %c0_i32_0 = arith.constant 0 : i32
    return %c0_i32, %arg0 : i32, i32
  }
}

</mosaic_0001>

<llo_original>
// kernel: tpu_custom_call.1
$region0: #{tpu_custom_call.1}
  #allocation0 [shape = 'u32[]', space=smem, size = 0x4, offset = 0x4, fixed_abs, tag = 'smem constant byte address 0x4 - core index']
  #allocation1 [shape = 'u32[144,128]{1,0:T(1,128)}', space=vmem, size = 0x12000, scoped, tag = 'internal scratch']
  %s0 = inlined_call_operand.hbm [shape: f32[16,32], index: 0, kind: input, shape index: {}]
  %s1 = inlined_call_operand.vmem [shape: f32[1,32], index: 1, kind: input, shape index: {}]
  %s2 = inlined_call_operand.hbm [shape: f32[1,16], index: 2, kind: output, shape index: {}]
  %s3 = sld [smem:[#allocation0]]
  $region22: #{tpu_custom_call.1} parent=0
    _
  %s5 = ssub.s32 1, %s3
  %s6 = scalar_select 0, %s5, %s3
  $region1: #{tpu_custom_call.1} parent=0
    #allocation2 [shape = 'u8[8192]{0}', space=vmem, size = 0x2000, scoped, tag = 'input window, operand 0, single buffered']
    #allocation3 [shape = 's32[1]{0}', space=sflag, size = 0x4, scoped, tag = 'scoped memory for tpu_custom_call.1']
    #allocation4 [shape = 's32[1]{0}', space=sflag, size = 0x4, scoped, tag = 'scoped memory for tpu_custom_call.1']
    #allocation5 [shape = 'u8[512]{0}', space=vmem, size = 0x400, scoped, tag = 'output window, operand 0, single buffered']
    %7 = vsyncpa [#allocation3], 0
    %8 = vsyncpa [#allocation4], 0
    // Predicated region
    $region2: #{tpu_custom_call.1} parent=1 // pred_check
      _
    $region3: #{tpu_custom_call.1} parent=1 // pred_check_branch
      %10 = sbr.rel (0) target = $region5
    $region4: #{tpu_custom_call.1} parent=1 // pred_region
      %s12 = ssub.s32 256, 256
      %13 = vsyncadd [#allocation3], %s12
      %s14 = sshll.u32 [#allocation2], 4
      %s15 = int_to_ptr.vmem [resolvable:$true] %s14
      %20 = dma.hbm_to_vmem [thread:$0]  %s0, 256, %s15, [#allocation3], 128, 128, 8
    $region5: #{tpu_custom_call.1} parent=1 // pred_fallthru
      _
    // Predicated region
    $region6: #{tpu_custom_call.1} parent=1 // pred_check
      _
    $region7: #{tpu_custom_call.1} parent=1 // pred_check_branch
      %22 = sbr.rel (0) target = $region9
    $region8: #{tpu_custom_call.1} parent=1 // pred_region
      _
    $region9: #{tpu_custom_call.1} parent=1 // pred_fallthru
      _
    // Predicated region
    $region10: #{tpu_custom_call.1} parent=1 // pred_check
      _
    $region11: #{tpu_custom_call.1} parent=1 // pred_check_branch
      %24 = sbr.rel (0) target = $region13
    $region12: #{tpu_custom_call.1} parent=1 // pred_region
      %25 = dma.done [#allocation3], 256
    $region13: #{tpu_custom_call.1} parent=1 // pred_fallthru
      _
    %v26 = vld [vmem:[#allocation2] sm:$0xff]
    %v27 = vld [vmem:[#allocation2 + $0x8] sm:$0xff]
    %v28 = vld [vmem:[%s1] sm:$0x1]
    %v30 = vlaneseq
    %v31 = vshrl.u32 %v30, 7
    %v32 = vsub.s32 0, %v31
    %v33 = vrot.slane %v28, %v32
    %v35 = vmul.f32 %v26, %v33
    %v36 = vmul.f32 %v27, %v33
    %vm37 = vcmask 261120
    %v38 = vsel %vm37, %v35, 0.0
    %39 = vadd.xlane.f32.xlu0 %v38
    %v40 = vpop.xlane.xlu0 %39
    %v41 = vsel %vm37, %v36, 0.0
    %42 = vadd.xlane.f32.xlu0 %v41
    %v43 = vpop.xlane.xlu0 %42
    %v44 = vtanh.pop %v40
    %v45 = vtanh.pop %v43
    %v48 = vlaneseq
    %v49 = vand.u32 %v48, 127
    %v50 = vlaneseq
    %v51 = vshrl.u32 %v50, 7
    %v52 = vsub.s32 %v49, %v51
    %v53 = vrot.slane %v44, %v52
    %v54 = vadd.s32 %v49, 4294967288
    %v55 = vlaneseq
    %v56 = vshrl.u32 %v55, 7
    %v57 = vsub.s32 %v54, %v56
    %v58 = vrot.slane %v45, %v57
    %vm59 = vcmask 130112
    %v60 = vsel %vm59, %v58, %v53
    %vm62 = vcmask 122880
    %63 = vst.msk [vmem:[#allocation5] sm:$0x1] %vm62, %v60
    // Predicated region
    $region14: #{tpu_custom_call.1} parent=1 // pred_check
      _
    $region15: #{tpu_custom_call.1} parent=1 // pred_check_branch
      %65 = sbr.rel (0) target = $region17
    $region16: #{tpu_custom_call.1} parent=1 // pred_region
      %s67 = ssub.s32 16, 16
      %68 = vsyncadd [#allocation4], %s67
      %s70 = sshll.u32 [#allocation5], 4
      %s71 = int_to_ptr.vmem [resolvable:$true] %s70
      %73 = dma.vmem_to_hbm [thread:$0]  %s71, 16, %s2, [#allocation4]
    $region17: #{tpu_custom_call.1} parent=1 // pred_fallthru
      _
    // Predicated region
    $region18: #{tpu_custom_call.1} parent=1 // pred_check
      _
    $region19: #{tpu_custom_call.1} parent=1 // pred_check_branch
      %75 = sbr.rel (0) target = $region21
    $region20: #{tpu_custom_call.1} parent=1 // pred_region
      %76 = dma.done [#allocation4], 16
    $region21: #{tpu_custom_call.1} parent=1 // pred_fallthru
      _
    %77 = vsyncpa [#allocation3], 1
    %78 = vsyncpa [#allocation4], 1

</llo_original>
